<compile_context>
chip_gen: v6e
topology: v6e:2x2x1
jax: 0.10.0
libtpu: 0.0.40
codegen_flags: <defaults>
</compile_context>

<pallas_src>
import functools

import jax
import jax.numpy as jnp
from jax.experimental import pallas as pl
from jax.experimental.pallas import tpu as pltpu


def _round_up(x, m):
    return ((x + m - 1) // m) * m


def _triplet_loss_kernel(a_ref, p_ref, n_ref, out_ref, *, margin, true_batch,
                         tile_rows):
    i = pl.program_id(0)

    @pl.when(i == 0)
    def _init():
        out_ref[0, 0] = jnp.float32(0.0)

    a = a_ref[...].astype(jnp.float32)
    p = p_ref[...].astype(jnp.float32)
    n = n_ref[...].astype(jnp.float32)

    # Fused: d_pos - d_neg = sum((n - p) * (2a - p - n), axis=1)  -> one reduce.
    diff = jnp.sum((n - p) * (2.0 * a - p - n), axis=1, keepdims=True)  # (TB, 1)
    losses = jnp.maximum(diff + jnp.float32(margin), 0.0)               # (TB, 1)

    # Mask rows past the true batch size (padding / remainder tile).
    row_ids = i * tile_rows + jax.lax.broadcasted_iota(jnp.int32, losses.shape, 0)
    losses = jnp.where(row_ids < true_batch, losses, 0.0)

    out_ref[0, 0] += jnp.sum(losses)

    @pl.when(i == pl.num_programs(0) - 1)
    def _finalize():
        out_ref[0, 0] = out_ref[0, 0] / jnp.float32(true_batch)


def triplet_loss(anchor, positive, negative, margin=1.0, tile_rows=None):
    """Pallas TPU implementation of TripletLoss.forward. Returns a scalar f32."""
    assert anchor.shape == positive.shape == negative.shape
    assert anchor.ndim == 2, "expected (B, D) embeddings"
    B, D = anchor.shape
    itemsize = jnp.dtype(anchor.dtype).itemsize

    # --- tile sizing -------------------------------------------------------
    # Per row: 3 inputs x (2 pipeline buffers x itemsize + 4 B f32 working copy).
    # Keep the whole working set well under the scoped VMEM limit we request
    # (32 MiB), which is safe on v5e / v6e / v7x alike.
    if tile_rows is None:
        vmem_budget = 24 * 1024 * 1024
        per_row_bytes = 3 * D * (2 * itemsize + 4)
        tb = vmem_budget // per_row_bytes
        tb = max(8, min(int(tb), 2048))
    else:
        tb = max(8, int(tile_rows))
    tb = (tb // 8) * 8
    tb = min(tb, _round_up(B, 8))

    padded_b = _round_up(B, tb)
    grid = padded_b // tb

    if padded_b != B:
        pad_cfg = ((0, padded_b - B), (0, 0))
        anchor = jnp.pad(anchor, pad_cfg)
        positive = jnp.pad(positive, pad_cfg)
        negative = jnp.pad(negative, pad_cfg)

    kernel = functools.partial(
        _triplet_loss_kernel,
        margin=float(margin),
        true_batch=int(B),
        tile_rows=int(tb),
    )

    in_spec = pl.BlockSpec((tb, D), lambda i: (i, 0))
    cost = pl.CostEstimate(
        flops=6 * B * D,
        transcendentals=0,
        bytes_accessed=3 * B * D * itemsize + 4,
    )

    out = pl.pallas_call(
        kernel,
        out_shape=jax.ShapeDtypeStruct((1, 1), jnp.float32),
        grid=(grid,),
        in_specs=[in_spec, in_spec, in_spec],
        out_specs=pl.BlockSpec((1, 1), lambda i: (0, 0),
                               memory_space=pltpu.SMEM),
        compiler_params=pltpu.CompilerParams(
            dimension_semantics=("arbitrary",),
            vmem_limit_bytes=32 * 1024 * 1024,
        ),
        cost_estimate=cost,
    )(anchor, positive, negative)
    return out[0, 0]


def triplet_loss_ref(anchor, positive, negative, margin=1.0):
    """Pure-JAX reference (mirrors the PyTorch module)."""
    a = anchor.astype(jnp.float32)
    p = positive.astype(jnp.float32)
    n = negative.astype(jnp.float32)
    d_pos = jnp.sum((a - p) ** 2, axis=1)
    d_neg = jnp.sum((a - n) ** 2, axis=1)
    return jnp.mean(jnp.maximum(d_pos - d_neg + margin, 0.0))


if __name__ == "__main__":
    key = jax.random.PRNGKey(0)

    # Test 1: small batch, single tile.
    k_a, k_p, k_n = jax.random.split(key, 3)
    B, D = 8, 32
    anchor = jax.random.normal(k_a, (B, D), dtype=jnp.float32)
    positive = jax.random.normal(k_p, (B, D), dtype=jnp.float32)
    negative = jax.random.normal(k_n, (B, D), dtype=jnp.float32)

    out1 = jax.block_until_ready(triplet_loss(anchor, positive, negative, margin=1.0))
    ref1 = triplet_loss_ref(anchor, positive, negative, margin=1.0)
    assert jnp.allclose(out1, ref1, rtol=1e-4, atol=1e-4), (out1, ref1)

    # Test 2: multi-tile grid with a remainder tile (exercises the accumulator
    # and the row masking). Forced small tile so the grid has >1 step.
    k_a2, k_p2, k_n2 = jax.random.split(jax.random.PRNGKey(1), 3)
    B2, D2 = 200, 128
    a2 = jax.random.normal(k_a2, (B2, D2), dtype=jnp.float32)
    p2 = jax.random.normal(k_p2, (B2, D2), dtype=jnp.float32)
    n2 = jax.random.normal(k_n2, (B2, D2), dtype=jnp.float32)

    out2 = jax.block_until_ready(
        triplet_loss(a2, p2, n2, margin=1.0, tile_rows=64))
    ref2 = triplet_loss_ref(a2, p2, n2, margin=1.0)
    assert jnp.allclose(out2, ref2, rtol=1e-4, atol=1e-4), (out2, ref2)

    print("KERNEL_OK")
</pallas_src>

<mosaic_0001>
module attributes {stable_mosaic.version = 11 : i64} {
  func.func @_triplet_loss_kernel(%arg0: i32, %arg1: memref<8x32xf32, #tpu.memory_space<vmem>>, %arg2: memref<8x32xf32, #tpu.memory_space<vmem>>, %arg3: memref<8x32xf32, #tpu.memory_space<vmem>>, %arg4: memref<1x1xf32, #tpu.memory_space<smem>>) attributes {dimension_semantics = [#tpu.dimension_semantics<arbitrary>], iteration_bounds = array<i64: 1>, scalar_prefetch = 0 : i64, scratch_operands = 0 : i64, tpu.core_type = #tpu.core_type<tc>, window_params = [{transform_indices = @transform_0, window_bounds = array<i64: 8, 32>}, {transform_indices = @transform_1, window_bounds = array<i64: 8, 32>}, {transform_indices = @transform_2, window_bounds = array<i64: 8, 32>}, {transform_indices = @transform_3, window_bounds = array<i64: 1, 1>}]} {
    %c0_i32 = arith.constant 0 : i32
    %0 = arith.cmpi eq, %arg0, %c0_i32 : i32
    %1 = arith.extui %0 : i1 to i32
    %c0_i32_0 = arith.constant 0 : i32
    %2 = arith.cmpi ne, %1, %c0_i32_0 : i32
    scf.if %2 {
      %cst_18 = arith.constant 0.000000e+00 : f32
      %c0_19 = arith.constant 0 : index
      %c0_20 = arith.constant 0 : index
      %36 = memref.load %arg4[%c0_19, %c0_20] : memref<1x1xf32, #tpu.memory_space<smem>>
      memref.store %cst_18, %arg4[%c0_19, %c0_20] : memref<1x1xf32, #tpu.memory_space<smem>>
    } else {
    }
    %c0 = arith.constant 0 : index
    %c0_1 = arith.constant 0 : index
    %3 = vector.load %arg1[%c0, %c0_1] : memref<8x32xf32, #tpu.memory_space<vmem>>, vector<8x32xf32>
    %c0_2 = arith.constant 0 : index
    %c0_3 = arith.constant 0 : index
    %4 = vector.load %arg2[%c0_2, %c0_3] : memref<8x32xf32, #tpu.memory_space<vmem>>, vector<8x32xf32>
    %c0_4 = arith.constant 0 : index
    %c0_5 = arith.constant 0 : index
    %5 = vector.load %arg3[%c0_4, %c0_5] : memref<8x32xf32, #tpu.memory_space<vmem>>, vector<8x32xf32>
    %6 = arith.subf %5, %4 : vector<8x32xf32>
    %cst = arith.constant 2.000000e+00 : f32
    %7 = vector.broadcast %cst : f32 to vector<8x32xf32>
    %8 = arith.mulf %7, %3 : vector<8x32xf32>
    %9 = arith.subf %8, %4 : vector<8x32xf32>
    %10 = arith.subf %9, %5 : vector<8x32xf32>
    %11 = arith.mulf %6, %10 : vector<8x32xf32>
    %cst_6 = arith.constant dense<0.000000e+00> : vector<8xf32>
    %12 = vector.multi_reduction <add>, %11, %cst_6 [1] : vector<8x32xf32> to vector<8xf32>
    %13 = vector.shape_cast %12 : vector<8xf32> to vector<8x1xf32>
    %cst_7 = arith.constant 1.000000e+00 : f32
    %14 = vector.broadcast %cst_7 : f32 to vector<8x1xf32>
    %15 = arith.addf %13, %14 : vector<8x1xf32>
    %cst_8 = arith.constant 0.000000e+00 : f32
    %16 = vector.broadcast %cst_8 : f32 to vector<8x1xf32>
    %17 = arith.maximumf %15, %16 : vector<8x1xf32>
    %c8_i32 = arith.constant 8 : i32
    %18 = arith.muli %arg0, %c8_i32 : i32
    %19 = tpu.iota {dimensions = array<i32: 0>} : vector<8x1xi32>
    %20 = vector.broadcast %18 : i32 to vector<8x1xi32>
    %21 = arith.addi %20, %19 : vector<8x1xi32>
    %c8_i32_9 = arith.constant 8 : i32
    %22 = vector.broadcast %c8_i32_9 : i32 to vector<8x1xi32>
    %23 = arith.cmpi slt, %21, %22 : vector<8x1xi32>
    %cst_10 = arith.constant 0.000000e+00 : f32
    %24 = vector.broadcast %cst_10 : f32 to vector<8x1xf32>
    %25 = arith.select %23, %17, %24 : vector<8x1xi1>, vector<8x1xf32>
    %c0_11 = arith.constant 0 : index
    %c0_12 = arith.constant 0 : index
    %26 = memref.load %arg4[%c0_11, %c0_12] : memref<1x1xf32, #tpu.memory_space<smem>>
    %27 = vector.shape_cast %25 : vector<8x1xf32> to vector<1x8x1xf32>
    %cst_13 = arith.constant dense<0.000000e+00> : vector<1xf32>
    %28 = vector.multi_reduction <add>, %27, %cst_13 [1, 2] : vector<1x8x1xf32> to vector<1xf32>
    %29 = vector.shape_cast %28 : vector<1xf32> to vector<1x1x1xf32>
    %30 = vector.extract %29[0, 0, 0] : f32 from vector<1x1x1xf32>
    %31 = arith.addf %26, %30 : f32
    %c0_14 = arith.constant 0 : index
    %c0_15 = arith.constant 0 : index
    %32 = memref.load %arg4[%c0_14, %c0_15] : memref<1x1xf32, #tpu.memory_space<smem>>
    memref.store %31, %arg4[%c0_14, %c0_15] : memref<1x1xf32, #tpu.memory_space<smem>>
    %c0_i32_16 = arith.constant 0 : i32
    %33 = arith.cmpi eq, %arg0, %c0_i32_16 : i32
    %34 = arith.extui %33 : i1 to i32
    %c0_i32_17 = arith.constant 0 : i32
    %35 = arith.cmpi ne, %34, %c0_i32_17 : i32
    scf.if %35 {
      %c0_18 = arith.constant 0 : index
      %c0_19 = arith.constant 0 : index
      %36 = memref.load %arg4[%c0_18, %c0_19] : memref<1x1xf32, #tpu.memory_space<smem>>
      %cst_20 = arith.constant 8.000000e+00 : f32
      %37 = arith.divf %36, %cst_20 : f32
      %c0_21 = arith.constant 0 : index
      %c0_22 = arith.constant 0 : index
      %38 = memref.load %arg4[%c0_21, %c0_22] : memref<1x1xf32, #tpu.memory_space<smem>>
      memref.store %37, %arg4[%c0_21, %c0_22] : memref<1x1xf32, #tpu.memory_space<smem>>
    } else {
    }
    return
  }
  func.func @transform_0(%arg0: i32) -> (i32, i32) {
    %c0_i32 = arith.constant 0 : i32
    %c0_i32_0 = arith.constant 0 : i32
    return %arg0, %c0_i32 : i32, i32
  }
  func.func @transform_1(%arg0: i32) -> (i32, i32) {
    %c0_i32 = arith.constant 0 : i32
    %c0_i32_0 = arith.constant 0 : i32
    return %arg0, %c0_i32 : i32, i32
  }
  func.func @transform_2(%arg0: i32) -> (i32, i32) {
    %c0_i32 = arith.constant 0 : i32
    %c0_i32_0 = arith.constant 0 : i32
    return %arg0, %c0_i32 : i32, i32
  }
  func.func @transform_3(%arg0: i32) -> (i32, i32) {
    %c0_i32 = arith.constant 0 : i32
    %c0_i32_0 = arith.constant 0 : i32
    %c0_i32_1 = arith.constant 0 : i32
    return %c0_i32, %c0_i32_0 : i32, i32
  }
}

</mosaic_0001>

<llo_original>
// kernel: tpu_custom_call.1
$region0: #{tpu_custom_call.1}
  #allocation0 [shape = 'u32[]', space=smem, size = 0x4, offset = 0x4, fixed_abs, tag = 'smem constant byte address 0x4 - core index']
  #allocation1 [shape = 'u32[144,128]{1,0:T(1,128)}', space=vmem, size = 0x12000, scoped, tag = 'internal scratch']
  %s0 = inlined_call_operand.hbm [shape: f32[8,32], index: 0, kind: input, shape index: {}]
  %s1 = inlined_call_operand.hbm [shape: f32[8,32], index: 1, kind: input, shape index: {}]
  %s2 = inlined_call_operand.hbm [shape: f32[8,32], index: 2, kind: input, shape index: {}]
  %s3 = inlined_call_operand.hbm [shape: f32[1,1], index: 3, kind: output, shape index: {}]
  %s4 = sld [smem:[#allocation0]]
  $region42: #{tpu_custom_call.1} parent=0
    _
  %s6 = ssub.s32 1, %s4
  %s7 = scalar_select 0, %s6, %s4
  $region1: #{tpu_custom_call.1} parent=0
    #allocation2 [shape = 'u8[4096]{0}', space=vmem, size = 0x1000, scoped, tag = 'input window, operand 0, single buffered']
    #allocation3 [shape = 's32[1]{0}', space=sflag, size = 0x4, scoped, tag = 'scoped memory for tpu_custom_call.1']
    #allocation4 [shape = 's32[1]{0}', space=sflag, size = 0x4, scoped, tag = 'scoped memory for tpu_custom_call.1']
    #allocation5 [shape = 'u8[4096]{0}', space=vmem, size = 0x1000, scoped, tag = 'input window, operand 1, single buffered']
    #allocation6 [shape = 's32[1]{0}', space=sflag, size = 0x4, scoped, tag = 'scoped memory for tpu_custom_call.1']
    #allocation7 [shape = 'u8[4096]{0}', space=vmem, size = 0x1000, scoped, tag = 'input window, operand 2, single buffered']
    #allocation8 [shape = 'u8[512]{0}', space=smem, size = 0x200, scoped, tag = 'output window, operand 0, single buffered']
    %8 = vsyncpa [#allocation3], 0
    %9 = vsyncpa [#allocation6], 0
    %10 = vsyncpa [#allocation4], 0
    // Predicated region
    $region2: #{tpu_custom_call.1} parent=1 // pred_check
      _
    $region3: #{tpu_custom_call.1} parent=1 // pred_check_branch
      %12 = sbr.rel (0) target = $region5
    $region4: #{tpu_custom_call.1} parent=1 // pred_region
      %s14 = ssub.s32 128, 128
      %15 = vsyncadd [#allocation3], %s14
      %s17 = sshll.u32 [#allocation2], 4
      %s18 = int_to_ptr.vmem [resolvable:$true] %s17
      %20 = dma.hbm_to_vmem [thread:$0]  %s0, 128, %s18, [#allocation3]
    $region5: #{tpu_custom_call.1} parent=1 // pred_fallthru
      _
    // Predicated region
    $region6: #{tpu_custom_call.1} parent=1 // pred_check
      _
    $region7: #{tpu_custom_call.1} parent=1 // pred_check_branch
      %22 = sbr.rel (0) target = $region9
    $region8: #{tpu_custom_call.1} parent=1 // pred_region
      %s24 = ssub.s32 128, 128
      %25 = vsyncadd [#allocation6], %s24
      %s27 = sshll.u32 [#allocation5], 4
      %s28 = int_to_ptr.vmem [resolvable:$true] %s27
      %30 = dma.hbm_to_vmem [thread:$0]  %s1, 128, %s28, [#allocation6]
    $region9: #{tpu_custom_call.1} parent=1 // pred_fallthru
      _
    // Predicated region
    $region10: #{tpu_custom_call.1} parent=1 // pred_check
      _
    $region11: #{tpu_custom_call.1} parent=1 // pred_check_branch
      %32 = sbr.rel (0) target = $region13
    $region12: #{tpu_custom_call.1} parent=1 // pred_region
      %s34 = ssub.s32 128, 128
      %35 = vsyncadd [#allocation6], %s34
      %s37 = sshll.u32 [#allocation7], 4
      %s38 = int_to_ptr.vmem [resolvable:$true] %s37
      %40 = dma.hbm_to_vmem [thread:$0]  %s2, 128, %s38, [#allocation6]
    $region13: #{tpu_custom_call.1} parent=1 // pred_fallthru
      _
    // Predicated region
    $region14: #{tpu_custom_call.1} parent=1 // pred_check
      _
    $region15: #{tpu_custom_call.1} parent=1 // pred_check_branch
      %42 = sbr.rel (0) target = $region17
    $region16: #{tpu_custom_call.1} parent=1 // pred_region
      %43 = dma.done [#allocation3], 128
    $region17: #{tpu_custom_call.1} parent=1 // pred_fallthru
      _
    // Predicated region
    $region18: #{tpu_custom_call.1} parent=1 // pred_check
      _
    $region19: #{tpu_custom_call.1} parent=1 // pred_check_branch
      %45 = sbr.rel (0) target = $region21
    $region20: #{tpu_custom_call.1} parent=1 // pred_region
      %46 = dma.done [#allocation6], 128
    $region21: #{tpu_custom_call.1} parent=1 // pred_fallthru
      _
    // Predicated region
    $region22: #{tpu_custom_call.1} parent=1 // pred_check
      _
    $region23: #{tpu_custom_call.1} parent=1 // pred_check_branch
      %48 = sbr.rel (0) target = $region25
    $region24: #{tpu_custom_call.1} parent=1 // pred_region
      %49 = dma.done [#allocation6], 128
    $region25: #{tpu_custom_call.1} parent=1 // pred_fallthru
      _
    %p50 = scmp.eq.s32.totalorder 0, 0
    // Predicated region
    $region26: #{tpu_custom_call.1} parent=1 // pred_check
      %p51 = pneg %p50
    $region27: #{tpu_custom_call.1} parent=1 // pred_check_branch
      %53 = sbr.rel (%p51) target = $region29
    $region28: #{tpu_custom_call.1} parent=1 // pred_region
      %s54 = scalar_lea.smem [#allocation8], 0
      %55 = sst [smem:[%s54]] 0.0
    $region29: #{tpu_custom_call.1} parent=1 // pred_fallthru
      _
    %v56 = vld [vmem:[#allocation2] sm:$0xff]
    %v57 = vld [vmem:[#allocation5] sm:$0xff]
    %v58 = vld [vmem:[#allocation7] sm:$0xff]
    %v59 = vsub.f32 %v58, %v57
    %v60 = vmul.f32 %v56, 2.0
    %v61 = vsub.f32 %v60, %v57
    %v62 = vsub.f32 %v61, %v58
    %v63 = vmul.f32 %v59, %v62
    %vm64 = vcmask 261120
    %v65 = vsel %vm64, %v63, 0.0
    %66 = vadd.xlane.f32.xlu0 %v65
    %v67 = vpop.xlane.xlu0 %66
    %v68 = vadd.f32 %v67, 1.0
    %v69 = vmax.f32 %v68, 0.0
    %s70 = smul.u32 0, 8
    %v71 = vlaneseq
    %v72 = vshrl.u32 %v71, 7
    %v73 = vstv %s70
    %v74 = vadd.s32 %v73, %v72
    %vm75 = vcmp.lt.s32.totalorder %v74, 8
    %v76 = vsel %vm75, %v69, 0.0
    %s77 = sld [smem:[#allocation8]]
    %vm78 = vcmask 7168
    %v79 = vsel %vm78, %v76, 0.0
    %80 = vadd.xlane.f32.xlu0 %v79
    %v81 = vpop.xlane.xlu0 %80
    %v82 = vrot.slane %v81, 4
    %v83 = vadd.f32 %v81, %v82
    %v84 = vrot.slane %v83, 2
    %v85 = vadd.f32 %v83, %v84
    %v86 = vrot.slane %v85, 1
    %v87 = vadd.f32 %v85, %v86
    %s88 = vtos %v87
    %s89 = sadd.f32 %s77, %s88
    %s90 = scalar_lea.smem [#allocation8], 0
    %91 = sst [smem:[%s90]] %s89
    // Predicated region
    $region30: #{tpu_custom_call.1} parent=1 // pred_check
      %p92 = pneg %p50
    $region31: #{tpu_custom_call.1} parent=1 // pred_check_branch
      %94 = sbr.rel (%p92) target = $region33
    $region32: #{tpu_custom_call.1} parent=1 // pred_region
      %s95 = sld [smem:[#allocation8]]
      %v96 = vrcp.pop 8.0
      %s97 = vtos %v96
      %s98 = smul.f32 %s95, %s97
      %99 = sst [smem:[%s90]] %s98
    $region33: #{tpu_custom_call.1} parent=1 // pred_fallthru
      _
    // Predicated region
    $region34: #{tpu_custom_call.1} parent=1 // pred_check
      _
    $region35: #{tpu_custom_call.1} parent=1 // pred_check_branch
      %101 = sbr.rel (0) target = $region37
    $region36: #{tpu_custom_call.1} parent=1 // pred_region
      %s103 = ssub.s32 16, 16
      %104 = vsyncadd [#allocation4], %s103
      %107 = dma.smem_to_hbm [#allocation8], 16, %s3, [#allocation4]
    $region37: #{tpu_custom_call.1} parent=1 // pred_fallthru
      _
    // Predicated region
    $region38: #{tpu_custom_call.1} parent=1 // pred_check
      _
    $region39: #{tpu_custom_call.1} parent=1 // pred_check_branch
      %109 = sbr.rel (0) target = $region41
    $region40: #{tpu_custom_call.1} parent=1 // pred_region
      %110 = dma.done [#allocation4], 16
    $region41: #{tpu_custom_call.1} parent=1 // pred_fallthru
      _
    %111 = sfence
    %112 = vsyncpa [#allocation3], 1
    %113 = vsyncpa [#allocation6], 1
    %114 = vsyncpa [#allocation4], 1

</llo_original>
